<compile_context>
chip_gen: v7x
topology: tpu7x:2x2x1
jax: 0.10.0
libtpu: 0.0.40
codegen_flags: <defaults>
</compile_context>

<pallas_src>
import jax
import jax.numpy as jnp
from jax.experimental import pallas as pl
from jax.experimental.pallas import tpu as pltpu

_LANES = 128
_SUBLANES = 8
# 8192 rows * 128 lanes * 4 B = 4 MiB per f32 input tile.
_MAX_TILE_ROWS = 8192


def _cdiv(a, b):
    return -(-a // b)


def _round_up(a, m):
    return _cdiv(a, m) * m


def _make_kernel(tile_rows, rows_per_b, needs_mask):
    """Builds the fused q_sample + identity-model + smooth-L1 partial-sum kernel."""

    def kernel(sa_ref, sb_ref, x_ref, n_ref, out_ref):
        b = pl.program_id(0)
        # Schedule scalars from SMEM (scalar prefetch): 4 bytes each per step.
        sa = sa_ref[b].astype(jnp.float32)          # sqrt(alphas_cumprod[t_b])
        omb = 1.0 - sb_ref[b].astype(jnp.float32)   # 1 - sqrt(1 - alphas_cumprod[t_b])

        x = x_ref[...].astype(jnp.float32)          # (1, TR, 128)
        n = n_ref[...].astype(jnp.float32)          # (1, TR, 128)

        # noise - model(q_sample(x, t)) with the identity model:
        #   n - (sa*x + sb*n) == (1 - sb)*n - sa*x
        diff = omb * n - sa * x
        ad = jnp.abs(diff)
        hub = jnp.where(ad < 1.0, 0.5 * diff * diff, ad - 0.5)  # smooth_l1, beta=1

        if needs_mask:
            # Tail tile of a batch element: rows >= rows_per_b are out-of-bounds
            # garbage -> select 0 for them (free VPU work, no wrapper-side pad).
            row = (pl.program_id(1) * tile_rows
                   + jax.lax.broadcasted_iota(jnp.int32, hub.shape, 1))
            hub = jnp.where(row < rows_per_b, hub, 0.0)

        r = hub.shape[1]
        if r % _SUBLANES:
            # Tiny-image fallback (rows_per_b < 8 or not a multiple of 8 with a
            # single full-dim tile): pad sublanes with zeros in-register so the
            # reduce below stays pure VPU adds.
            pad = _SUBLANES - r % _SUBLANES
            hub = jnp.concatenate(
                [hub, jnp.zeros((1, pad, _LANES), jnp.float32)], axis=1)

        # vreg-shaped partial sum: sublane-aligned, lane-dense unmasked store.
        out_ref[0, 0] = hub.reshape(-1, _SUBLANES, _LANES).sum(axis=0)

    return kernel


def gaussian_diffusion_loss(images, noise, sqrt_ac_t, sqrt_om_ac_t):
    """Pallas forward pass of GaussianDiffusion (training branch).

    images, noise:            (B, C, H, W)
    sqrt_ac_t, sqrt_om_ac_t:  (B,) per-batch gathered schedule values
    returns: scalar float32 smooth-L1 loss (mean reduction)
    """
    B = images.shape[0]
    total = int(images.size)          # true element count for the mean
    N = total // B

    x2 = images.reshape(B, N)         # metadata-only reshapes (contiguous NCHW)
    n2 = noise.reshape(B, N)

    if N % _LANES:
        # Rare fallback (C*H*W not a multiple of 128): lane-pad with zeros, which
        # contribute exactly 0 to the huber sum; the mean divides by `total`.
        # TODO(synk): replace this extra HBM pass with an in-kernel lane mask.
        n_pad = _round_up(N, _LANES)
        x2 = jnp.zeros((B, n_pad), images.dtype).at[:, :N].set(x2)
        n2 = jnp.zeros((B, n_pad), noise.dtype).at[:, :N].set(n2)
    else:
        n_pad = N

    rows_per_b = n_pad // _LANES
    x3 = x2.reshape(B, rows_per_b, _LANES)
    n3 = n2.reshape(B, rows_per_b, _LANES)

    if rows_per_b <= _MAX_TILE_ROWS:
        tile_rows = rows_per_b        # full second-minor dim: always a legal block
    else:
        tile_rows = _MAX_TILE_ROWS    # multiple of 8
    tiles_per_b = _cdiv(rows_per_b, tile_rows)
    needs_mask = (rows_per_b % tile_rows) != 0

    sa = sqrt_ac_t.astype(jnp.float32)
    sb = sqrt_om_ac_t.astype(jnp.float32)

    itemsize = jnp.dtype(images.dtype).itemsize
    bytes_accessed = (2 * B * N * itemsize                             # x + noise
                      + 2 * B * 4                                      # SMEM scalars
                      + B * tiles_per_b * _SUBLANES * _LANES * 4)      # partials

    kernel = _make_kernel(tile_rows, rows_per_b, needs_mask)

    partials = pl.pallas_call(
        kernel,
        out_shape=jax.ShapeDtypeStruct((B, tiles_per_b, _SUBLANES, _LANES),
                                       jnp.float32),
        grid_spec=pltpu.PrefetchScalarGridSpec(
            num_scalar_prefetch=2,
            grid=(B, tiles_per_b),
            in_specs=[
                pl.BlockSpec((1, tile_rows, _LANES),
                             lambda b, t, sa_r, sb_r: (b, t, 0)),   # x
                pl.BlockSpec((1, tile_rows, _LANES),
                             lambda b, t, sa_r, sb_r: (b, t, 0)),   # noise
            ],
            out_specs=pl.BlockSpec((1, 1, _SUBLANES, _LANES),
                                   lambda b, t, sa_r, sb_r: (b, t, 0, 0)),
        ),
        compiler_params=pltpu.CompilerParams(
            # Each step writes its own output block -> both axes shardable
            # across v7x's two TensorCores.
            dimension_semantics=("parallel", "parallel"),
            vmem_limit_bytes=32 * 1024 * 1024,   # >= 16 MiB footprint, safe on v7x
        ),
        cost_estimate=pl.CostEstimate(
            flops=8 * B * N,
            transcendentals=0,
            bytes_accessed=bytes_accessed,
        ),
    )(sa, sb, x3, n3)

    # Single cross-lane reduce + mean (padding/mask rows contribute 0).
    return jnp.sum(partials) / jnp.float32(total)


if __name__ == "__main__":
    # Small shapes consistent with the module: batch=2, channels=4, image=16x16
    B, C, H, W = 2, 4, 16, 16
    T = 8  # num_timesteps

    # Deterministic schedule parameters (linear beta schedule), as in __init__
    betas = jnp.linspace(1e-4, 0.02, T, dtype=jnp.float32)
    alphas = 1.0 - betas
    alphas_cumprod = jnp.cumprod(alphas)
    sqrt_alphas_cumprod = jnp.sqrt(alphas_cumprod)
    sqrt_one_minus_alphas_cumprod = jnp.sqrt(1.0 - alphas_cumprod)
    # (alphas_cumprod_prev, sqrt_recip_alphas, posterior_variance feed only the
    #  sampling path, which forward() never takes in training mode.)
    # TODO(synk): p_sample_loop (eval branch) is a host-side python loop over
    # timesteps with per-step randn; not exercised by forward() in training mode,
    # so it is not implemented as a kernel.

    key = jax.random.PRNGKey(0)
    k_img, k_t, k_noise = jax.random.split(key, 3)
    images = jax.random.normal(k_img, (B, C, H, W), dtype=jnp.float32)
    timesteps = jax.random.randint(k_t, (B,), 0, T)
    noise = jax.random.normal(k_noise, (B, C, H, W), dtype=jnp.float32)

    # Gather of per-batch schedule scalars is glue (plain JAX)
    sa_t = sqrt_alphas_cumprod[timesteps]
    sb_t = sqrt_one_minus_alphas_cumprod[timesteps]

    loss = gaussian_diffusion_loss(images, noise, sa_t, sb_t)
    loss = jax.block_until_ready(loss)

    # Pure-JAX reference for correctness
    sa_b = sa_t.reshape(B, 1, 1, 1)
    sb_b = sb_t.reshape(B, 1, 1, 1)
    x_noisy = sa_b * images + sb_b * noise
    diff = noise - x_noisy
    ad = jnp.abs(diff)
    ref = jnp.mean(jnp.where(ad < 1.0, 0.5 * diff * diff, ad - 0.5))
    assert jnp.allclose(loss, ref, atol=1e-5, rtol=1e-5), (loss, ref)

    print("KERNEL_OK")
</pallas_src>

<mosaic_0001>
module attributes {stable_mosaic.version = 11 : i64} {
  func.func @kernel(%arg0: i32, %arg1: i32, %arg2: memref<2xf32, #tpu.memory_space<smem>>, %arg3: memref<2xf32, #tpu.memory_space<smem>>, %arg4: memref<1x8x128xf32, #tpu.memory_space<vmem>>, %arg5: memref<1x8x128xf32, #tpu.memory_space<vmem>>, %arg6: memref<1x1x8x128xf32, #tpu.memory_space<vmem>>) attributes {dimension_semantics = [#tpu.dimension_semantics<parallel>, #tpu.dimension_semantics<parallel>], iteration_bounds = array<i64: 2, 1>, scalar_prefetch = 2 : i64, scratch_operands = 0 : i64, tpu.core_type = #tpu.core_type<tc>, window_params = [{transform_indices = @transform_0, window_bounds = array<i64: 1, 8, 128>}, {transform_indices = @transform_1, window_bounds = array<i64: 1, 8, 128>}, {transform_indices = @transform_2, window_bounds = array<i64: 1, 1, 8, 128>}]} {
    %0 = arith.index_cast %arg0 : i32 to index
    %1 = memref.load %arg2[%0] : memref<2xf32, #tpu.memory_space<smem>>
    %2 = arith.index_cast %arg0 : i32 to index
    %3 = memref.load %arg3[%2] : memref<2xf32, #tpu.memory_space<smem>>
    %cst = arith.constant 1.000000e+00 : f32
    %4 = arith.subf %cst, %3 : f32
    %c0 = arith.constant 0 : index
    %c0_0 = arith.constant 0 : index
    %c0_1 = arith.constant 0 : index
    %5 = vector.load %arg4[%c0, %c0_0, %c0_1] : memref<1x8x128xf32, #tpu.memory_space<vmem>>, vector<1x8x128xf32>
    %c0_2 = arith.constant 0 : index
    %c0_3 = arith.constant 0 : index
    %c0_4 = arith.constant 0 : index
    %6 = vector.load %arg5[%c0_2, %c0_3, %c0_4] : memref<1x8x128xf32, #tpu.memory_space<vmem>>, vector<1x8x128xf32>
    %7 = vector.broadcast %4 : f32 to vector<1x8x128xf32>
    %8 = arith.mulf %7, %6 : vector<1x8x128xf32>
    %9 = vector.broadcast %1 : f32 to vector<1x8x128xf32>
    %10 = arith.mulf %9, %5 : vector<1x8x128xf32>
    %11 = arith.subf %8, %10 : vector<1x8x128xf32>
    %12 = math.absf %11 : vector<1x8x128xf32>
    %cst_5 = arith.constant 1.000000e+00 : f32
    %13 = vector.broadcast %cst_5 : f32 to vector<1x8x128xf32>
    %14 = arith.cmpf olt, %12, %13 : vector<1x8x128xf32>
    %cst_6 = arith.constant 5.000000e-01 : f32
    %15 = vector.broadcast %cst_6 : f32 to vector<1x8x128xf32>
    %16 = arith.mulf %15, %11 : vector<1x8x128xf32>
    %17 = arith.mulf %16, %11 : vector<1x8x128xf32>
    %cst_7 = arith.constant 5.000000e-01 : f32
    %18 = vector.broadcast %cst_7 : f32 to vector<1x8x128xf32>
    %19 = arith.subf %12, %18 : vector<1x8x128xf32>
    %20 = arith.select %14, %17, %19 : vector<1x8x128xi1>, vector<1x8x128xf32>
    %cst_8 = arith.constant dense<0.000000e+00> : vector<8x128xf32>
    %21 = vector.multi_reduction <add>, %20, %cst_8 [0] : vector<1x8x128xf32> to vector<8x128xf32>
    %c0_9 = arith.constant 0 : index
    %c0_10 = arith.constant 0 : index
    %c0_11 = arith.constant 0 : index
    %c0_12 = arith.constant 0 : index
    %22 = vector.load %arg6[%c0_9, %c0_10, %c0_11, %c0_12] : memref<1x1x8x128xf32, #tpu.memory_space<vmem>>, vector<1x1x8x128xf32>
    %23 = vector.shape_cast %22 : vector<1x1x8x128xf32> to vector<8x128xf32>
    %24 = vector.shape_cast %21 : vector<8x128xf32> to vector<1x1x8x128xf32>
    tpu.vector_store %arg6[%c0_9, %c0_10, %c0_11, %c0_12], %24 {strides = array<i32>} : memref<1x1x8x128xf32, #tpu.memory_space<vmem>>, vector<1x1x8x128xf32>,
    return
  }
  func.func @transform_0(%arg0: i32, %arg1: i32, %arg2: memref<2xf32, #tpu.memory_space<smem>>, %arg3: memref<2xf32, #tpu.memory_space<smem>>) -> (i32, i32, i32) {
    %c0_i32 = arith.constant 0 : i32
    %c0_i32_0 = arith.constant 0 : i32
    return %arg0, %arg1, %c0_i32 : i32, i32, i32
  }
  func.func @transform_1(%arg0: i32, %arg1: i32, %arg2: memref<2xf32, #tpu.memory_space<smem>>, %arg3: memref<2xf32, #tpu.memory_space<smem>>) -> (i32, i32, i32) {
    %c0_i32 = arith.constant 0 : i32
    %c0_i32_0 = arith.constant 0 : i32
    return %arg0, %arg1, %c0_i32 : i32, i32, i32
  }
  func.func @transform_2(%arg0: i32, %arg1: i32, %arg2: memref<2xf32, #tpu.memory_space<smem>>, %arg3: memref<2xf32, #tpu.memory_space<smem>>) -> (i32, i32, i32, i32) {
    %c0_i32 = arith.constant 0 : i32
    %c0_i32_0 = arith.constant 0 : i32
    %c0_i32_1 = arith.constant 0 : i32
    return %arg0, %arg1, %c0_i32, %c0_i32_0 : i32, i32, i32, i32
  }
}

</mosaic_0001>

<llo_original>
// kernel: tpu_custom_call.1
$region0: #{tpu_custom_call.1}
  #allocation0 [shape = 'u32[]', space=smem, size = 0x4, offset = 0x4, fixed_abs, tag = 'smem constant byte address 0x4 - core index']
  #allocation1 [shape = 'u32[144,128]{1,0:T(1,128)}', space=vmem, size = 0x12000, scoped, tag = 'internal scratch']
  #allocation2 [shape = 's32[1]{0}', space=sflag, size = 0x4, scoped, tag = 'scoped memory for tpu_custom_call.1']
  #allocation3 [shape = 'u8[512]{0}', space=smem, size = 0x200, scoped, tag = 'prefetched SMEM operand 0']
  #allocation4 [shape = 'u8[512]{0}', space=smem, size = 0x200, scoped, tag = 'prefetched SMEM operand 1']
  %s0 = inlined_call_operand.hbm [shape: f32[2], index: 0, kind: input, shape index: {}]
  %s1 = inlined_call_operand.vmem [shape: f32[2], index: 1, kind: input, shape index: {}]
  %s2 = inlined_call_operand.hbm [shape: f32[2,8,128], index: 2, kind: input, shape index: {}]
  %s3 = inlined_call_operand.hbm [shape: f32[2,8,128], index: 3, kind: input, shape index: {}]
  %s4 = inlined_call_operand.hbm [shape: f32[2,1,8,128], index: 4, kind: output, shape index: {}]
  %s5 = sld [smem:[#allocation0]]
  $region49: #{tpu_custom_call.1} parent=0
    _
  %s7 = ssub.s32 1, %s5
  %s8 = scalar_select 0, %s7, %s5
  %10 = dma.hbm_to_smem %s0, 16, [#allocation3], [#allocation2]
  %s11 = sshll.u32 %s1, 4
  %s12 = int_to_ptr.vmem [resolvable:$true] %s11
  %14 = dma.vmem_to_smem %s12, 16, [#allocation4], [#allocation2]
  %15 = dma.done [#allocation2], 32
  %16 = sfence
  $region1: #{tpu_custom_call.1} parent=0
    #allocation5 [shape = 'u8[8192]{0}', space=vmem, size = 0x2000, scoped, tag = 'input window, operand 2']
    #allocation6 [shape = 's32[2]{0}', space=sflag, size = 0x8, scoped, tag = 'scoped memory for tpu_custom_call.1']
    #allocation7 [shape = 's32[2]{0}', space=sflag, size = 0x8, scoped, tag = 'scoped memory for tpu_custom_call.1']
    #allocation8 [shape = 'u8[8192]{0}', space=vmem, size = 0x2000, scoped, tag = 'input window, operand 3']
    #allocation9 [shape = 's32[2]{0}', space=sflag, size = 0x8, scoped, tag = 'scoped memory for tpu_custom_call.1']
    #allocation10 [shape = 'u8[8192]{0}', space=vmem, size = 0x2000, scoped, tag = 'output window, operand 0']
    %17 = vsyncpa [#allocation6], 0
    %s18 = scalar_lea.sflag [#allocation6], 1
    %19 = vsyncpa %s18, 0
    %20 = vsyncpa [#allocation9], 0
    %s21 = scalar_lea.sflag [#allocation9], 1
    %22 = vsyncpa %s21, 0
    %23 = vsyncpa [#allocation7], 0
    %s24 = scalar_lea.sflag [#allocation7], 1
    %25 = vsyncpa %s24, 0
    loop: start=0, step=1, limit=4
    $region2: #{tpu_custom_call.1} parent=1 // loop_pre_header
      _
    $region3: #{tpu_custom_call.1} parent=1 // loop_header
      %s27 = sphi 0, %s31
      %p28 = scmp.ge.s32.totalorder %s27, 4
      %s34 = sphi 0, %s46
      %s35 = sphi 0, %s42
      %s36 = sphi 0, %s34
      %s37 = sphi 0, %s35
      %s38 = sphi 0, %s36
      %s39 = sphi 0, %s37
      %s51 = sphi 0, %s53
      %s54 = sphi 0, %s51
      %s55 = sphi 0, %s54
      %s71 = sphi 0, %s55
      %s79 = sphi 0, %s81
      %s82 = sphi 0, %s79
      %s83 = sphi 0, %s82
      %s99 = sphi 0, %s83
      %s107 = sphi 0, %s109
      %s110 = sphi 0, %s107
      %s111 = sphi 0, %s110
      %s127 = sphi 0, %s111
    $region4: #{tpu_custom_call.1} parent=1 // loop_header_branch
      %30 = sbr.rel (%p28) target = $region8
    $region5: #{tpu_custom_call.1} parent=1 // loop_body
      %s32 = ssub.s32 %s27, 1
      %s33 = ssub.s32 %s27, 2
      %s40 = sadd.s32 1, %s35
      %p41 = scmp.ge.s32.totalorder %s40, 1
      %s42 = scalar_select %p41, 0, %s40
      %s43 = sadd.s32 1, %s34
      %s44 = scalar_select %p41, %s43, %s34
      %p45 = scmp.ge.s32.totalorder %s44, 2
      %s46 = scalar_select %p45, 0, %s44
      %s47 = ssub.s32 %s34, %s46
      %s48 = ssub.s32 %s35, %s42
      %s49 = sor.u32 %s47, %s48
      %p50 = scmp.eq.s32.totalorder %s49, 0
      %s52 = sadd.s32 %s51, 1
      %s53 = scalar_select %p50, %s51, %s52
      %p56 = pneg %p50
      %p57 = scmp.eq.s32.totalorder %s27, 1
      %p58 = por %p56, %p57
      %p59 = scmp.ne.s32.totalorder %s51, %s54
      %p60 = scmp.eq.s32.totalorder %s27, 0
      %p61 = por %p59, %p60
      %p62 = scmp.ne.s32.totalorder %s51, %s54
      %p63 = scmp.eq.s32.totalorder %s32, 1
      %p64 = por %p62, %p63
      %p65 = scmp.ne.s32.totalorder %s54, %s55
      %p66 = scmp.eq.s32.totalorder %s32, 0
      %p67 = por %p65, %p66
      %p68 = scmp.ne.s32.totalorder %s54, %s55
      %p69 = scmp.eq.s32.totalorder %s33, 1
      %p70 = por %p68, %p69
      %p72 = scmp.ne.s32.totalorder %s55, %s71
      %p73 = scmp.eq.s32.totalorder %s33, 0
      %p74 = por %p72, %p73
      %s75 = ssub.s32 %s34, %s46
      %s76 = ssub.s32 %s35, %s42
      %s77 = sor.u32 %s75, %s76
      %p78 = scmp.eq.s32.totalorder %s77, 0
      %s80 = sadd.s32 %s79, 1
      %s81 = scalar_select %p78, %s79, %s80
      %p84 = pneg %p78
      %p85 = scmp.eq.s32.totalorder %s27, 1
      %p86 = por %p84, %p85
      %p87 = scmp.ne.s32.totalorder %s79, %s82
      %p88 = scmp.eq.s32.totalorder %s27, 0
      %p89 = por %p87, %p88
      %p90 = scmp.ne.s32.totalorder %s79, %s82
      %p91 = scmp.eq.s32.totalorder %s32, 1
      %p92 = por %p90, %p91
      %p93 = scmp.ne.s32.totalorder %s82, %s83
      %p94 = scmp.eq.s32.totalorder %s32, 0
      %p95 = por %p93, %p94
      %p96 = scmp.ne.s32.totalorder %s82, %s83
      %p97 = scmp.eq.s32.totalorder %s33, 1
      %p98 = por %p96, %p97
      %p100 = scmp.ne.s32.totalorder %s83, %s99
      %p101 = scmp.eq.s32.totalorder %s33, 0
      %p102 = por %p100, %p101
      %s103 = ssub.s32 %s34, %s46
      %s104 = ssub.s32 %s35, %s42
      %s105 = sor.u32 %s103, %s104
      %p106 = scmp.eq.s32.totalorder %s105, 0
      %s108 = sadd.s32 %s107, 1
      %s109 = scalar_select %p106, %s107, %s108
      %p112 = pneg %p106
      %p113 = scmp.eq.s32.totalorder %s27, 1
      %p114 = por %p112, %p113
      %p115 = scmp.ne.s32.totalorder %s107, %s110
      %p116 = scmp.eq.s32.totalorder %s27, 0
      %p117 = por %p115, %p116
      %p118 = scmp.ne.s32.totalorder %s107, %s110
      %p119 = scmp.eq.s32.totalorder %s32, 1
      %p120 = por %p118, %p119
      %p121 = scmp.ne.s32.totalorder %s110, %s111
      %p122 = scmp.eq.s32.totalorder %s32, 0
      %p123 = por %p121, %p122
      %p124 = scmp.ne.s32.totalorder %s110, %s111
      %p125 = scmp.eq.s32.totalorder %s33, 1
      %p126 = por %p124, %p125
      %p128 = scmp.ne.s32.totalorder %s111, %s127
      %p129 = scmp.eq.s32.totalorder %s33, 0
      %p130 = por %p128, %p129
      %p131 = scmp.le.s32.totalorder 1, %s27
      %p132 = scmp.lt.s32.totalorder %s27, 3
      %p133 = pnand %p131, %p132
      %p134 = pneg %p133
      // Predicated region
      $region9: #{tpu_custom_call.1} parent=5 // pred_check
        _
      $region10: #{tpu_custom_call.1} parent=5 // pred_check_branch
        %136 = sbr.rel (%p133) target = $region12
      $region11: #{tpu_custom_call.1} parent=5 // pred_region
        %s137 = ssub.s32 %s27, 1
      $region12: #{tpu_custom_call.1} parent=5 // pred_fallthru
        _
      %p138 = scmp.lt.s32.totalorder %s27, 2
      // Predicated region
      $region13: #{tpu_custom_call.1} parent=5 // pred_check
        %p139 = pneg %p138
      $region14: #{tpu_custom_call.1} parent=5 // pred_check_branch
        %141 = sbr.rel (%p139) target = $region16
      $region15: #{tpu_custom_call.1} parent=5 // pred_region
        // Predicated region
        $region17: #{tpu_custom_call.1} parent=15 // pred_check
          %p142 = pneg %p61
        $region18: #{tpu_custom_call.1} parent=15 // pred_check_branch
          %144 = sbr.rel (%p142) target = $region20
        $region19: #{tpu_custom_call.1} parent=15 // pred_region
          %s145 = sand.u32 %s51, 1
          %s146 = scalar_lea.sflag [#allocation6], %s145
          %s147 = sand.u32 %s51, 1
          %s148 = smul.addr %s147, 8
          %s149 = scalar_lea.vmem [#allocation5], %s148
          %s151 = ssub.s32 128, 128
          %152 = vsyncadd %s146, %s151
          %s153 = sadd.s32 %s35, %s34
          %s154 = smul.addr %s153, 128
          %s155 = scalar_lea.hbm %s2, %s154
          %s157 = sshll.u32 %s149, 4
          %s158 = int_to_ptr.vmem [resolvable:$true] %s157
          %160 = dma.hbm_to_vmem [thread:$0]  %s155, 128, %s158, %s146
        $region20: #{tpu_custom_call.1} parent=15 // pred_fallthru
          _
        // Predicated region
        $region21: #{tpu_custom_call.1} parent=15 // pred_check
          %p161 = pneg %p89
        $region22: #{tpu_custom_call.1} parent=15 // pred_check_branch
          %163 = sbr.rel (%p161) target = $region24
        $region23: #{tpu_custom_call.1} parent=15 // pred_region
          %s164 = sand.u32 %s79, 1
          %s165 = scalar_lea.sflag [#allocation9], %s164
          %s166 = sand.u32 %s79, 1
          %s167 = smul.addr %s166, 8
          %s168 = scalar_lea.vmem [#allocation8], %s167
          %s170 = ssub.s32 128, 128
          %171 = vsyncadd %s165, %s170
          %s172 = sadd.s32 %s35, %s34
          %s173 = smul.addr %s172, 128
          %s174 = scalar_lea.hbm %s3, %s173
          %s176 = sshll.u32 %s168, 4
          %s177 = int_to_ptr.vmem [resolvable:$true] %s176
          %179 = dma.hbm_to_vmem [thread:$0]  %s174, 128, %s177, %s165
        $region24: #{tpu_custom_call.1} parent=15 // pred_fallthru
          _
      $region16: #{tpu_custom_call.1} parent=5 // pred_fallthru
        _
      %p180 = scmp.le.s32.totalorder 1, %s27
      %p181 = scmp.lt.s32.totalorder %s27, 3
      %p182 = pnand %p180, %p181
      %p183 = pneg %p182
      // Predicated region
      $region25: #{tpu_custom_call.1} parent=5 // pred_check
        _
      $region26: #{tpu_custom_call.1} parent=5 // pred_check_branch
        %185 = sbr.rel (%p182) target = $region28
      $region27: #{tpu_custom_call.1} parent=5 // pred_region
        %s186 = ssub.s32 %s27, 1
        %s187 = sand.u32 %s54, 1
        %s188 = scalar_lea.sflag [#allocation6], %s187
        %s189 = sand.u32 %s54, 1
        %s190 = smul.addr %s189, 8
        %s191 = scalar_lea.vmem [#allocation5], %s190
        // Predicated region
        $region29: #{tpu_custom_call.1} parent=27 // pred_check
          %p192 = pneg %p67
        $region30: #{tpu_custom_call.1} parent=27 // pred_check_branch
          %194 = sbr.rel (%p192) target = $region32
        $region31: #{tpu_custom_call.1} parent=27 // pred_region
          %195 = dma.done %s188, 128
        $region32: #{tpu_custom_call.1} parent=27 // pred_fallthru
          _
        %s196 = sand.u32 %s82, 1
        %s197 = scalar_lea.sflag [#allocation9], %s196
        %s198 = sand.u32 %s82, 1
        %s199 = smul.addr %s198, 8
        %s200 = scalar_lea.vmem [#allocation8], %s199
        // Predicated region
        $region33: #{tpu_custom_call.1} parent=27 // pred_check
          %p201 = pneg %p95
        $region34: #{tpu_custom_call.1} parent=27 // pred_check_branch
          %203 = sbr.rel (%p201) target = $region36
        $region35: #{tpu_custom_call.1} parent=27 // pred_region
          %204 = dma.done %s197, 128
        $region36: #{tpu_custom_call.1} parent=27 // pred_fallthru
          _
        %s205 = sand.u32 %s54, 1
        %s206 = scalar_lea.sflag [#allocation6], %s205
        %s207 = sand.u32 %s54, 1
        %s208 = smul.addr %s207, 8
        %s209 = scalar_lea.vmem [#allocation5], %s208
        %p210 = pneg %p67
        %p211 = pneg %p64
        %s212 = sand.u32 %s82, 1
        %s213 = scalar_lea.sflag [#allocation9], %s212
        %s214 = sand.u32 %s82, 1
        %s215 = smul.addr %s214, 8
        %s216 = scalar_lea.vmem [#allocation8], %s215
        %p217 = pneg %p95
        %p218 = pneg %p92
        %p219 = pneg %p123
        %p220 = pneg %p120
        %s221 = sand.u32 %s110, 1
        %s222 = scalar_lea.sflag [#allocation7], %s221
        %s223 = sand.u32 %s110, 1
        %s224 = smul.addr %s223, 8
        %s225 = scalar_lea.vmem [#allocation10], %s224
        %s226 = sld [smem:[#allocation3 + %s36]]
        %s227 = sld [smem:[#allocation4 + %s36]]
        %s228 = ssub.f32 1.0, %s227
        %v229 = vld [vmem:[%s191] sm:$0xff]
        %v230 = vld [vmem:[%s200] sm:$0xff]
        %v231 = vstv %s228
        %v232 = vmul.f32 %v231, %v230
        %v233 = vstv %s226
        %v234 = vmul.f32 %v233, %v229
        %v235 = vsub.f32 %v232, %v234
        %v236 = vand.u32 2147483647, %v235
        %vm237 = vcmp.lt.f32.partialorder %v236, 1.0
        %v238 = vmul.f32 %v235, 0.5
        %v239 = vmul.f32 %v238, %v235
        %v240 = vsub.f32 %v236, 0.5
        %v241 = vsel %vm237, %v239, %v240
        %v242 = vadd.f32 %v241, 0.0
        %243 = vst [vmem:[%s225] sm:$0xff] %v242
        %s244 = sand.u32 %s110, 1
        %s245 = scalar_lea.sflag [#allocation7], %s244
        %s246 = sand.u32 %s110, 1
        %s247 = smul.addr %s246, 8
        %s248 = scalar_lea.vmem [#allocation10], %s247
        // Predicated region
        $region37: #{tpu_custom_call.1} parent=27 // pred_check
          %p249 = pneg %p120
        $region38: #{tpu_custom_call.1} parent=27 // pred_check_branch
          %251 = sbr.rel (%p249) target = $region40
        $region39: #{tpu_custom_call.1} parent=27 // pred_region
          %s253 = ssub.s32 128, 128
          %254 = vsyncadd %s245, %s253
          %s255 = sadd.s32 %s37, %s36
          %s256 = smul.addr %s255, 128
          %s257 = scalar_lea.hbm %s4, %s256
          %s259 = sshll.u32 %s248, 4
          %s260 = int_to_ptr.vmem [resolvable:$true] %s259
          %262 = dma.vmem_to_hbm [thread:$0]  %s260, 128, %s257, %s245
        $region40: #{tpu_custom_call.1} parent=27 // pred_fallthru
          _
      $region28: #{tpu_custom_call.1} parent=5 // pred_fallthru
        _
      %p263 = scmp.le.s32.totalorder 2, %s27
      // Predicated region
      $region41: #{tpu_custom_call.1} parent=5 // pred_check
        %p264 = pneg %p263
      $region42: #{tpu_custom_call.1} parent=5 // pred_check_branch
        %266 = sbr.rel (%p264) target = $region44
      $region43: #{tpu_custom_call.1} parent=5 // pred_region
        %s267 = ssub.s32 %s27, 2
        // Predicated region
        $region45: #{tpu_custom_call.1} parent=43 // pred_check
          %p268 = pneg %p126
        $region46: #{tpu_custom_call.1} parent=43 // pred_check_branch
          %270 = sbr.rel (%p268) target = $region48
        $region47: #{tpu_custom_call.1} parent=43 // pred_region
          %s271 = sand.u32 %s111, 1
          %s272 = scalar_lea.sflag [#allocation7], %s271
          %s273 = sand.u32 %s111, 1
          %s274 = smul.addr %s273, 8
          %s275 = scalar_lea.vmem [#allocation10], %s274
          %276 = dma.done %s272, 128
        $region48: #{tpu_custom_call.1} parent=43 // pred_fallthru
          _
      $region44: #{tpu_custom_call.1} parent=5 // pred_fallthru
        _
    $region6: #{tpu_custom_call.1} parent=1 // loop_footer
      %s31 = sadd.s32 1, %s27
    $region7: #{tpu_custom_call.1} parent=1 // loop_footer_branch
      %26 = sbr.rel target = $region3
    $region8: #{tpu_custom_call.1} parent=1 // loop_exit
      _
    %277 = vsyncpa [#allocation6], 1
    %s278 = scalar_lea.sflag [#allocation6], 1
    %279 = vsyncpa %s278, 1
    %280 = vsyncpa [#allocation9], 1
    %s281 = scalar_lea.sflag [#allocation9], 1
    %282 = vsyncpa %s281, 1
    %283 = vsyncpa [#allocation7], 1
    %s284 = scalar_lea.sflag [#allocation7], 1
    %285 = vsyncpa %s284, 1

</llo_original>
